<compile_context>
chip_gen: v7x
topology: tpu7x:2x2x1
jax: 0.10.0
libtpu: 0.0.40
codegen_flags: <defaults>
</compile_context>

<pallas_src>
import functools

import numpy as np
import jax
import jax.numpy as jnp
from jax import lax
from jax.experimental import pallas as pl
from jax.experimental.pallas import tpu as pltpu

_LANES = 128
_SUB_ROWS = 512          # packed rows per in-kernel compute sub-chunk
_MAX_PACKED_DIM = 2048   # beyond this, block-diagonal packing is not worth it


# --------------------------------------------------------------------------- #
# Parameter packing (done ONCE, outside the per-call hot path)                 #
# --------------------------------------------------------------------------- #
def _packing_group(input_size, hidden_size, output_size, max_group=64):
    """Smallest G with G*in, G*hidden, G*out all multiples of 128 lanes."""
    for g in range(1, max_group + 1):
        if ((g * input_size) % _LANES == 0 and (g * hidden_size) % _LANES == 0
                and (g * output_size) % _LANES == 0):
            return g
    return 0


def _chunk_factor(g, d_in, d_out):
    """Largest n | g keeping (g//n)*d_in and (g//n)*d_out multiples of 128.

    Lets the kernel skip the all-zero off-diagonal quadrants of a packed
    block-diagonal layer: each 128-aligned activation chunk only multiplies
    its own diagonal chunk of the packed weight.
    """
    best = 1
    for n in range(1, g + 1):
        if (g % n == 0 and ((g // n) * d_in) % _LANES == 0
                and ((g // n) * d_out) % _LANES == 0):
            best = n
    return best


def _stacked_block_diag(w, g, n_chunks):
    """kron(I_{g//n}, w) stacked n times along rows -> (g*din, g*dout // n)."""
    blk = jnp.kron(jnp.eye(g // n_chunks, dtype=w.dtype), w)
    if n_chunks == 1:
        return blk
    return jnp.concatenate([blk] * n_chunks, axis=0)


def pack_params(params, mxu_dtype=jnp.bfloat16):
    """Pack RelationalModel weights for the lane-dense Pallas kernel.

    The per-row feature widths (e.g. 16/32) are << 128 lanes, so G rows are
    packed into one lane-dense packed row and the Linear layers are applied with
    block-diagonal (kron(I_G, W)) weights.  Weights are shipped in `mxu_dtype`
    (default bf16: MXU-native on all generations; accumulation and bias+ReLU
    stay f32).  Pass mxu_dtype=jnp.float32 for exact f32 Linear semantics.
    """
    w1, b1, w2, b2, w3, b3, w4, b4 = params
    input_size, hidden_size = w1.shape
    output_size = w3.shape[1]

    g = _packing_group(input_size, hidden_size, output_size)
    if g == 0 or g * max(input_size, hidden_size, output_size) > _MAX_PACKED_DIM:
        # TODO(synk): lane-sparse fallback (G=1, masked stores) for large hidden
        # sizes where block-diagonal packing would blow up the weight tiles.
        g = 1

    n1 = _chunk_factor(g, input_size, hidden_size)
    n2 = _chunk_factor(g, hidden_size, hidden_size)
    n3 = _chunk_factor(g, hidden_size, output_size)
    n4 = _chunk_factor(g, output_size, output_size)

    w1p = _stacked_block_diag(w1, g, n1).astype(mxu_dtype)
    w2p = _stacked_block_diag(w2, g, n2).astype(mxu_dtype)
    w3p = _stacked_block_diag(w3, g, n3).astype(mxu_dtype)
    w4p = _stacked_block_diag(w4, g, n4).astype(mxu_dtype)
    b1p = jnp.tile(b1.reshape(1, -1), (1, g)).astype(jnp.float32)
    b2p = jnp.tile(b2.reshape(1, -1), (1, g)).astype(jnp.float32)
    b3p = jnp.tile(b3.reshape(1, -1), (1, g)).astype(jnp.float32)
    b4p = jnp.tile(b4.reshape(1, -1), (1, g)).astype(jnp.float32)
    return (w1p, b1p, w2p, b2p, w3p, b3p, w4p, b4p)


# --------------------------------------------------------------------------- #
# Kernel                                                                       #
# --------------------------------------------------------------------------- #
def _mlp_layer(h, w_ref, b_ref, n_chunks):
    """One (block-diagonal) Linear + ReLU.  MXU dtype = packed weight dtype,
    f32 accumulation, f32 bias + ReLU."""
    w = w_ref[...]
    hh = h.astype(w.dtype)
    if n_chunks == 1:
        acc = jnp.dot(hh, w, preferred_element_type=jnp.float32)
    else:
        # Skip the all-zero off-diagonal quadrants: each 128-aligned input chunk
        # only needs its own diagonal chunk of the packed weight.
        cw_in = w.shape[0] // n_chunks
        acc = jnp.concatenate(
            [jnp.dot(hh[:, c * cw_in:(c + 1) * cw_in],
                     w[c * cw_in:(c + 1) * cw_in, :],
                     preferred_element_type=jnp.float32)
             for c in range(n_chunks)],
            axis=-1)
    return jnp.maximum(acc + b_ref[...], 0.0)


def _make_kernel(n1, n2, n3, n4, n_sub, sub_rows):
    def kernel(x_ref, w1_ref, b1_ref, w2_ref, b2_ref, w3_ref, b3_ref,
               w4_ref, b4_ref, o_ref):
        def mlp(h):
            h = _mlp_layer(h, w1_ref, b1_ref, n1)
            h = _mlp_layer(h, w2_ref, b2_ref, n2)
            h = _mlp_layer(h, w3_ref, b3_ref, n3)
            h = _mlp_layer(h, w4_ref, b4_ref, n4)
            return h

        if n_sub == 1:
            o_ref[...] = mlp(x_ref[...]).astype(o_ref.dtype)
        else:
            # Decouple the (large) DMA tile from the compute tile: run the full
            # 4-layer chain per 512-row sub-chunk to bound vreg/VMEM live ranges.
            def body(s, carry):
                r0 = pl.multiple_of(s * sub_rows, sub_rows)
                o_ref[pl.ds(r0, sub_rows), :] = mlp(
                    x_ref[pl.ds(r0, sub_rows), :]).astype(o_ref.dtype)
                return carry

            lax.fori_loop(0, n_sub, body, 0)

    return kernel


# --------------------------------------------------------------------------- #
# Wrapper                                                                      #
# --------------------------------------------------------------------------- #
@functools.partial(jax.jit, static_argnames=("tile_rows", "out_dtype"))
def relational_model_forward(x, packed_params, *, tile_rows=32768, out_dtype=None):
    """x: [batch, n_relations, input_size] -> [batch, n_relations, output_size].

    packed_params: output of pack_params().  tile_rows: original rows per grid
    step (default 32768 -> ~2 MiB of input per step).  out_dtype: optional
    output dtype (e.g. jnp.bfloat16) to halve writeback bytes.
    """
    w1p, b1p, w2p, b2p, w3p, b3p, w4p, b4p = packed_params
    batch_size, n_relations, input_size = x.shape
    gi = w1p.shape[0]
    gh = b1p.shape[1]
    go = b3p.shape[1]
    G = gi // input_size
    output_size = go // G
    n1 = gh // w1p.shape[1]
    n2 = gh // w2p.shape[1]
    n3 = go // w3p.shape[1]
    n4 = go // w4p.shape[1]
    out_dt = x.dtype if out_dtype is None else out_dtype

    m = batch_size * n_relations
    x2d = x.reshape(m, input_size)

    # Only pad when B*R is not a multiple of G (rare); padding implies one full
    # input copy + one output slice copy, so the aligned path avoids it entirely.
    pad = (-m) % G
    if pad:
        x2d = jnp.pad(x2d, ((0, pad), (0, 0)))
    mp = (m + pad) // G
    # Free row-major reshape: (m, in) -> (m/G, G*in) is lane-dense (G*in % 128 == 0).
    x_p = x2d.reshape(mp, gi)

    # ---- tile selection (big DMA tiles; non-divisible grids use masked blocks) --
    tile_cap = max(8, tile_rows // G)
    if mp <= min(tile_cap, _SUB_ROWS):
        tile_p, grid_len, n_sub, sub_rows = mp, 1, 1, mp  # single full-array block
    else:
        tile_p = max(8, (min(tile_cap, mp) // 8) * 8)
        sub_rows = min(_SUB_ROWS, tile_p)
        tile_p = (tile_p // sub_rows) * sub_rows
        grid_len = pl.cdiv(mp, tile_p)
        n_sub = tile_p // sub_rows
    # TODO(synk): on v7x, force an even grid split for mid-size single-block
    # inputs once a reliable core-count query is available.

    kernel = _make_kernel(n1, n2, n3, n4, n_sub, sub_rows)

    flops = 2 * mp * sum(int(w.shape[0]) * int(w.shape[1])
                         for w in (w1p, w2p, w3p, w4p))
    weight_bytes = sum(int(a.size) * a.dtype.itemsize
                       for a in (w1p, b1p, w2p, b2p, w3p, b3p, w4p, b4p))
    bytes_accessed = (int(x_p.size) * x_p.dtype.itemsize
                      + mp * go * np.dtype(out_dt).itemsize
                      + weight_bytes)
    cost = pl.CostEstimate(flops=flops, transcendentals=0,
                           bytes_accessed=bytes_accessed)

    row_map = lambda i: (i, 0)
    full_map = lambda i: (0, 0)

    # TODO(synk): pipeline_mode=pl.Buffered(1) on the resident weight blocks would
    # free ~0.5 MiB of redundant second buffers; skipped for API robustness.
    out_p = pl.pallas_call(
        kernel,
        out_shape=jax.ShapeDtypeStruct((mp, go), out_dt),
        grid_spec=pltpu.PrefetchScalarGridSpec(
            num_scalar_prefetch=0,
            grid=(grid_len,),
            in_specs=[
                pl.BlockSpec((tile_p, gi), row_map),   # packed x tile
                pl.BlockSpec(w1p.shape, full_map),     # resident packed weights
                pl.BlockSpec(b1p.shape, full_map),
                pl.BlockSpec(w2p.shape, full_map),
                pl.BlockSpec(b2p.shape, full_map),
                pl.BlockSpec(w3p.shape, full_map),
                pl.BlockSpec(b3p.shape, full_map),
                pl.BlockSpec(w4p.shape, full_map),
                pl.BlockSpec(b4p.shape, full_map),
            ],
            out_specs=pl.BlockSpec((tile_p, go), row_map),
        ),
        compiler_params=pltpu.CompilerParams(
            dimension_semantics=("parallel",)),
        cost_estimate=cost,
    )(x_p, w1p, b1p, w2p, b2p, w3p, b3p, w4p, b4p)

    # Free row-major reshape back; slice only if we padded.
    out2d = out_p.reshape(mp * G, output_size)
    if pad:
        out2d = out2d[:m]
    return out2d.reshape(batch_size, n_relations, output_size)


# --------------------------------------------------------------------------- #
# Reference / params                                                           #
# --------------------------------------------------------------------------- #
def init_params(key, input_size, output_size, hidden_size, dtype=jnp.float32):
    """Deterministic synthetic params. Weights stored as (in, out) = PyTorch weight.T."""
    ks = jax.random.split(key, 8)

    def lin(kw, kb, fan_in, fan_out):
        bound = 1.0 / float(np.sqrt(fan_in))
        w = jax.random.uniform(kw, (fan_in, fan_out), dtype, -bound, bound)
        b = jax.random.uniform(kb, (1, fan_out), dtype, -bound, bound)
        return w, b

    w1, b1 = lin(ks[0], ks[1], input_size, hidden_size)
    w2, b2 = lin(ks[2], ks[3], hidden_size, hidden_size)
    w3, b3 = lin(ks[4], ks[5], hidden_size, output_size)
    w4, b4 = lin(ks[6], ks[7], output_size, output_size)
    return (w1, b1, w2, b2, w3, b3, w4, b4)


def reference_forward(x, params):
    """Pure-JAX reference mirroring the PyTorch forward (ReLU after every Linear)."""
    w1, b1, w2, b2, w3, b3, w4, b4 = params
    b, r, f = x.shape
    h = x.reshape(-1, f)
    h = jnp.maximum(h @ w1 + b1, 0.0)
    h = jnp.maximum(h @ w2 + b2, 0.0)
    h = jnp.maximum(h @ w3 + b3, 0.0)
    h = jnp.maximum(h @ w4 + b4, 0.0)
    return h.reshape(b, r, w4.shape[1])


if __name__ == "__main__":
    batch_size, n_relations = 2, 8
    input_size, hidden_size, output_size = 16, 32, 16

    key = jax.random.PRNGKey(0)
    kx, kp, kx2, kx3 = jax.random.split(key, 4)
    x = jax.random.normal(kx, (batch_size, n_relations, input_size), jnp.float32)
    params = init_params(kp, input_size, output_size, hidden_size)
    ref = reference_forward(x, params)

    # Default path: bf16 MXU operands, f32 accumulation + bias + ReLU, f32 I/O.
    packed_bf16 = pack_params(params)               # packed once, outside hot path
    out = jax.block_until_ready(relational_model_forward(x, packed_bf16))
    assert out.shape == (batch_size, n_relations, output_size)
    assert jnp.allclose(out, ref, atol=5e-2, rtol=5e-2), "bf16-MXU mismatch vs reference"

    # Exact f32 MXU path (module's f32 Linear semantics).
    packed_f32 = pack_params(params, mxu_dtype=jnp.float32)
    out32 = jax.block_until_ready(relational_model_forward(x, packed_f32))
    assert jnp.allclose(out32, ref, atol=5e-3, rtol=5e-3), "f32 mismatch vs reference"

    # Optional bf16 output (halves writeback bytes on v6e/v7x).
    out_bf = jax.block_until_ready(
        relational_model_forward(x, packed_bf16, out_dtype=jnp.bfloat16))
    assert jnp.allclose(out_bf.astype(jnp.float32), ref, atol=1e-1, rtol=1e-1), \
        "bf16-output mismatch vs reference"

    # Larger run: multi-step parallel grid, in-kernel row sub-chunking, and a
    # masked partial final block -- with zero wrapper-side pad/slice copies.
    x_big = jax.random.normal(kx2, (12, 1024, input_size), jnp.float32)
    out_big = jax.block_until_ready(
        relational_model_forward(x_big, packed_bf16, tile_rows=8192))
    ref_big = reference_forward(x_big, params)
    assert jnp.allclose(out_big, ref_big, atol=5e-2, rtol=5e-2), "tiled mismatch vs reference"

    # Ragged row count (B*R not a multiple of the packing group) -> tiny pad fallback.
    x_odd = jax.random.normal(kx3, (3, 7, input_size), jnp.float32)
    out_odd = jax.block_until_ready(relational_model_forward(x_odd, packed_f32))
    ref_odd = reference_forward(x_odd, params)
    assert jnp.allclose(out_odd, ref_odd, atol=5e-3, rtol=5e-3), "ragged mismatch vs reference"

    print("KERNEL_OK")
</pallas_src>

<mosaic_0001>
module attributes {stable_mosaic.version = 11 : i64} {
  func.func @kernel(%arg0: i32, %arg1: memref<2x128xf32, #tpu.memory_space<vmem>>, %arg2: memref<128x256xbf16, #tpu.memory_space<vmem>>, %arg3: memref<1x256xf32, #tpu.memory_space<vmem>>, %arg4: memref<256x128xbf16, #tpu.memory_space<vmem>>, %arg5: memref<1x256xf32, #tpu.memory_space<vmem>>, %arg6: memref<256x128xbf16, #tpu.memory_space<vmem>>, %arg7: memref<1x128xf32, #tpu.memory_space<vmem>>, %arg8: memref<128x128xbf16, #tpu.memory_space<vmem>>, %arg9: memref<1x128xf32, #tpu.memory_space<vmem>>, %arg10: memref<2x128xf32, #tpu.memory_space<vmem>>) attributes {dimension_semantics = [#tpu.dimension_semantics<parallel>], iteration_bounds = array<i64: 1>, scalar_prefetch = 0 : i64, scratch_operands = 0 : i64, tpu.core_type = #tpu.core_type<tc>, window_params = [{transform_indices = @transform_0, window_bounds = array<i64: 2, 128>}, {pipeline_mode = #tpu.pipeline_mode<synchronous>, transform_indices = @transform_1, window_bounds = array<i64: 128, 256>}, {pipeline_mode = #tpu.pipeline_mode<synchronous>, transform_indices = @transform_2, window_bounds = array<i64: 1, 256>}, {pipeline_mode = #tpu.pipeline_mode<synchronous>, transform_indices = @transform_3, window_bounds = array<i64: 256, 128>}, {pipeline_mode = #tpu.pipeline_mode<synchronous>, transform_indices = @transform_4, window_bounds = array<i64: 1, 256>}, {pipeline_mode = #tpu.pipeline_mode<synchronous>, transform_indices = @transform_5, window_bounds = array<i64: 256, 128>}, {pipeline_mode = #tpu.pipeline_mode<synchronous>, transform_indices = @transform_6, window_bounds = array<i64: 1, 128>}, {pipeline_mode = #tpu.pipeline_mode<synchronous>, transform_indices = @transform_7, window_bounds = array<i64: 128, 128>}, {pipeline_mode = #tpu.pipeline_mode<synchronous>, transform_indices = @transform_8, window_bounds = array<i64: 1, 128>}, {transform_indices = @transform_9, window_bounds = array<i64: 2, 128>}]} {
    %c0 = arith.constant 0 : index
    %c0_0 = arith.constant 0 : index
    %0 = vector.load %arg1[%c0, %c0_0] : memref<2x128xf32, #tpu.memory_space<vmem>>, vector<2x128xf32>
    %c0_1 = arith.constant 0 : index
    %c0_2 = arith.constant 0 : index
    %1 = vector.load %arg2[%c0_1, %c0_2] : memref<128x256xbf16, #tpu.memory_space<vmem>>, vector<128x256xbf16>
    %2 = arith.truncf %0 : vector<2x128xf32> to vector<2x128xbf16>
    %cst = arith.constant dense<0.000000e+00> : vector<2x256xf32>
    %3 = tpu.matmul %2, %1, %cst {dimension_numbers = #tpu.dot_dimension_numbers<[1], [0], [0], [1], [0, 0, 1, 1], [], []>} : vector<2x128xbf16>, vector<128x256xbf16>, vector<2x256xf32> -> vector<2x256xf32>
    %c0_3 = arith.constant 0 : index
    %c0_4 = arith.constant 0 : index
    %4 = vector.load %arg3[%c0_3, %c0_4] : memref<1x256xf32, #tpu.memory_space<vmem>>, vector<1x256xf32>
    %5 = vector.broadcast %4 : vector<1x256xf32> to vector<2x256xf32>
    %6 = arith.addf %3, %5 : vector<2x256xf32>
    %cst_5 = arith.constant 0.000000e+00 : f32
    %7 = vector.broadcast %cst_5 : f32 to vector<2x256xf32>
    %8 = arith.maximumf %6, %7 : vector<2x256xf32>
    %c0_6 = arith.constant 0 : index
    %c0_7 = arith.constant 0 : index
    %9 = vector.load %arg4[%c0_6, %c0_7] : memref<256x128xbf16, #tpu.memory_space<vmem>>, vector<256x128xbf16>
    %10 = arith.truncf %8 : vector<2x256xf32> to vector<2x256xbf16>
    %11 = vector.extract_strided_slice %10 {offsets = [0, 0], sizes = [2, 128], strides = [1, 1]} : vector<2x256xbf16> to vector<2x128xbf16>
    %12 = vector.extract_strided_slice %9 {offsets = [0, 0], sizes = [128, 128], strides = [1, 1]} : vector<256x128xbf16> to vector<128x128xbf16>
    %cst_8 = arith.constant dense<0.000000e+00> : vector<2x128xf32>
    %13 = tpu.matmul %11, %12, %cst_8 {dimension_numbers = #tpu.dot_dimension_numbers<[1], [0], [0], [1], [0, 0, 1, 1], [], []>} : vector<2x128xbf16>, vector<128x128xbf16>, vector<2x128xf32> -> vector<2x128xf32>
    %14 = vector.extract_strided_slice %10 {offsets = [0, 128], sizes = [2, 128], strides = [1, 1]} : vector<2x256xbf16> to vector<2x128xbf16>
    %15 = vector.extract_strided_slice %9 {offsets = [128, 0], sizes = [128, 128], strides = [1, 1]} : vector<256x128xbf16> to vector<128x128xbf16>
    %cst_9 = arith.constant dense<0.000000e+00> : vector<2x128xf32>
    %16 = tpu.matmul %14, %15, %cst_9 {dimension_numbers = #tpu.dot_dimension_numbers<[1], [0], [0], [1], [0, 0, 1, 1], [], []>} : vector<2x128xbf16>, vector<128x128xbf16>, vector<2x128xf32> -> vector<2x128xf32>
    %17 = tpu.concatenate %13, %16 in 1 : vector<2x128xf32>, vector<2x128xf32> -> vector<2x256xf32>
    %c0_10 = arith.constant 0 : index
    %c0_11 = arith.constant 0 : index
    %18 = vector.load %arg5[%c0_10, %c0_11] : memref<1x256xf32, #tpu.memory_space<vmem>>, vector<1x256xf32>
    %19 = vector.broadcast %18 : vector<1x256xf32> to vector<2x256xf32>
    %20 = arith.addf %17, %19 : vector<2x256xf32>
    %cst_12 = arith.constant 0.000000e+00 : f32
    %21 = vector.broadcast %cst_12 : f32 to vector<2x256xf32>
    %22 = arith.maximumf %20, %21 : vector<2x256xf32>
    %c0_13 = arith.constant 0 : index
    %c0_14 = arith.constant 0 : index
    %23 = vector.load %arg6[%c0_13, %c0_14] : memref<256x128xbf16, #tpu.memory_space<vmem>>, vector<256x128xbf16>
    %24 = arith.truncf %22 : vector<2x256xf32> to vector<2x256xbf16>
    %cst_15 = arith.constant dense<0.000000e+00> : vector<2x128xf32>
    %25 = tpu.matmul %24, %23, %cst_15 {dimension_numbers = #tpu.dot_dimension_numbers<[1], [0], [0], [1], [0, 0, 1, 1], [], []>} : vector<2x256xbf16>, vector<256x128xbf16>, vector<2x128xf32> -> vector<2x128xf32>
    %c0_16 = arith.constant 0 : index
    %c0_17 = arith.constant 0 : index
    %26 = vector.load %arg7[%c0_16, %c0_17] : memref<1x128xf32, #tpu.memory_space<vmem>>, vector<1x128xf32>
    %27 = vector.broadcast %26 : vector<1x128xf32> to vector<2x128xf32>
    %28 = arith.addf %25, %27 : vector<2x128xf32>
    %cst_18 = arith.constant 0.000000e+00 : f32
    %29 = vector.broadcast %cst_18 : f32 to vector<2x128xf32>
    %30 = arith.maximumf %28, %29 : vector<2x128xf32>
    %c0_19 = arith.constant 0 : index
    %c0_20 = arith.constant 0 : index
    %31 = vector.load %arg8[%c0_19, %c0_20] : memref<128x128xbf16, #tpu.memory_space<vmem>>, vector<128x128xbf16>
    %32 = arith.truncf %30 : vector<2x128xf32> to vector<2x128xbf16>
    %cst_21 = arith.constant dense<0.000000e+00> : vector<2x128xf32>
    %33 = tpu.matmul %32, %31, %cst_21 {dimension_numbers = #tpu.dot_dimension_numbers<[1], [0], [0], [1], [0, 0, 1, 1], [], []>} : vector<2x128xbf16>, vector<128x128xbf16>, vector<2x128xf32> -> vector<2x128xf32>
    %c0_22 = arith.constant 0 : index
    %c0_23 = arith.constant 0 : index
    %34 = vector.load %arg9[%c0_22, %c0_23] : memref<1x128xf32, #tpu.memory_space<vmem>>, vector<1x128xf32>
    %35 = vector.broadcast %34 : vector<1x128xf32> to vector<2x128xf32>
    %36 = arith.addf %33, %35 : vector<2x128xf32>
    %cst_24 = arith.constant 0.000000e+00 : f32
    %37 = vector.broadcast %cst_24 : f32 to vector<2x128xf32>
    %38 = arith.maximumf %36, %37 : vector<2x128xf32>
    %c0_25 = arith.constant 0 : index
    %c0_26 = arith.constant 0 : index
    %39 = vector.load %arg10[%c0_25, %c0_26] : memref<2x128xf32, #tpu.memory_space<vmem>>, vector<2x128xf32>
    tpu.vector_store %arg10[%c0_25, %c0_26], %38 {strides = array<i32>} : memref<2x128xf32, #tpu.memory_space<vmem>>, vector<2x128xf32>,
    return
  }
  func.func @transform_0(%arg0: i32) -> (i32, i32) {
    %c0_i32 = arith.constant 0 : i32
    %c0_i32_0 = arith.constant 0 : i32
    return %arg0, %c0_i32 : i32, i32
  }
  func.func @transform_1(%arg0: i32) -> (i32, i32) {
    %c0_i32 = arith.constant 0 : i32
    %c0_i32_0 = arith.constant 0 : i32
    %c0_i32_1 = arith.constant 0 : i32
    return %c0_i32, %c0_i32_0 : i32, i32
  }
  func.func @transform_2(%arg0: i32) -> (i32, i32) {
    %c0_i32 = arith.constant 0 : i32
    %c0_i32_0 = arith.constant 0 : i32
    %c0_i32_1 = arith.constant 0 : i32
    return %c0_i32, %c0_i32_0 : i32, i32
  }
  func.func @transform_3(%arg0: i32) -> (i32, i32) {
    %c0_i32 = arith.constant 0 : i32
    %c0_i32_0 = arith.constant 0 : i32
    %c0_i32_1 = arith.constant 0 : i32
    return %c0_i32, %c0_i32_0 : i32, i32
  }
  func.func @transform_4(%arg0: i32) -> (i32, i32) {
    %c0_i32 = arith.constant 0 : i32
    %c0_i32_0 = arith.constant 0 : i32
    %c0_i32_1 = arith.constant 0 : i32
    return %c0_i32, %c0_i32_0 : i32, i32
  }
  func.func @transform_5(%arg0: i32) -> (i32, i32) {
    %c0_i32 = arith.constant 0 : i32
    %c0_i32_0 = arith.constant 0 : i32
    %c0_i32_1 = arith.constant 0 : i32
    return %c0_i32, %c0_i32_0 : i32, i32
  }
  func.func @transform_6(%arg0: i32) -> (i32, i32) {
    %c0_i32 = arith.constant 0 : i32
    %c0_i32_0 = arith.constant 0 : i32
    %c0_i32_1 = arith.constant 0 : i32
    return %c0_i32, %c0_i32_0 : i32, i32
  }
  func.func @transform_7(%arg0: i32) -> (i32, i32) {
    %c0_i32 = arith.constant 0 : i32
    %c0_i32_0 = arith.constant 0 : i32
    %c0_i32_1 = arith.constant 0 : i32
    return %c0_i32, %c0_i32_0 : i32, i32
  }
  func.func @transform_8(%arg0: i32) -> (i32, i32) {
    %c0_i32 = arith.constant 0 : i32
    %c0_i32_0 = arith.constant 0 : i32
    %c0_i32_1 = arith.constant 0 : i32
    return %c0_i32, %c0_i32_0 : i32, i32
  }
  func.func @transform_9(%arg0: i32) -> (i32, i32) {
    %c0_i32 = arith.constant 0 : i32
    %c0_i32_0 = arith.constant 0 : i32
    return %arg0, %c0_i32 : i32, i32
  }
}

</mosaic_0001>

<llo_original>
// kernel: relational_model_forward.1
$region0: #{relational_model_forward.1}
  #allocation0 [shape = 'u32[]', space=smem, size = 0x4, offset = 0x4, fixed_abs, tag = 'smem constant byte address 0x4 - core index']
  #allocation1 [shape = 'u32[144,128]{1,0:T(1,128)}', space=vmem, size = 0x12000, scoped, tag = 'internal scratch']
  %s0 = inlined_call_operand.vmem [shape: f32[2,128], index: 0, kind: input, shape index: {}]
  %s1 = inlined_call_operand.hbm [shape: bf16[128,256], index: 1, kind: input, shape index: {}]
  %s2 = inlined_call_operand.vmem [shape: f32[1,256], index: 2, kind: input, shape index: {}]
  %s3 = inlined_call_operand.hbm [shape: bf16[256,128], index: 3, kind: input, shape index: {}]
  %s4 = inlined_call_operand.vmem [shape: f32[1,256], index: 4, kind: input, shape index: {}]
  %s5 = inlined_call_operand.hbm [shape: bf16[256,128], index: 5, kind: input, shape index: {}]
  %s6 = inlined_call_operand.vmem [shape: f32[1,128], index: 6, kind: input, shape index: {}]
  %s7 = inlined_call_operand.hbm [shape: bf16[128,128], index: 7, kind: input, shape index: {}]
  %s8 = inlined_call_operand.vmem [shape: f32[1,128], index: 8, kind: input, shape index: {}]
  %s9 = inlined_call_operand.vmem [shape: f32[2,128], index: 9, kind: output, shape index: {}]
  %s10 = sld [smem:[#allocation0]]
  $region62: #{relational_model_forward.1} parent=0
    _
  %s12 = ssub.s32 1, %s10
  %s13 = scalar_select 0, %s12, %s10
  $region1: #{relational_model_forward.1} parent=0
    #allocation2 [shape = 'u8[65536]{0}', space=vmem, size = 0x10000, scoped, tag = 'input window, operand 1, single buffered']
    #allocation3 [shape = 's32[1]{0}', space=sflag, size = 0x4, scoped, tag = 'scoped memory for relational_model_forward.1']
    #allocation4 [shape = 'u8[65536]{0}', space=vmem, size = 0x10000, scoped, tag = 'input window, operand 3, single buffered']
    #allocation5 [shape = 's32[1]{0}', space=sflag, size = 0x4, scoped, tag = 'scoped memory for relational_model_forward.1']
    #allocation6 [shape = 'u8[65536]{0}', space=vmem, size = 0x10000, scoped, tag = 'input window, operand 5, single buffered']
    #allocation7 [shape = 'u8[32768]{0}', space=vmem, size = 0x8000, scoped, tag = 'input window, operand 7, single buffered']
    #allocation8 [shape = 's32[1]{0}', space=sflag, size = 0x4, scoped, tag = 'scoped memory for relational_model_forward.1']
    %14 = vsyncpa [#allocation3], 0
    %15 = vsyncpa [#allocation5], 0
    %16 = vsyncpa [#allocation8], 0
    // Predicated region
    $region2: #{relational_model_forward.1} parent=1 // pred_check
      _
    $region3: #{relational_model_forward.1} parent=1 // pred_check_branch
      %18 = sbr.rel (0) target = $region5
    $region4: #{relational_model_forward.1} parent=1 // pred_region
      _
    $region5: #{relational_model_forward.1} parent=1 // pred_fallthru
      _
    // Predicated region
    $region6: #{relational_model_forward.1} parent=1 // pred_check
      _
    $region7: #{relational_model_forward.1} parent=1 // pred_check_branch
      %20 = sbr.rel (0) target = $region9
    $region8: #{relational_model_forward.1} parent=1 // pred_region
      %s22 = ssub.s32 2048, 2048
      %23 = vsyncadd [#allocation3], %s22
      %s24 = sshll.u32 [#allocation2], 4
      %s25 = int_to_ptr.vmem [resolvable:$true] %s24
      %30 = dma.hbm_to_vmem [thread:$0]  %s1, 2048, %s25, [#allocation3], 128, 128, 8
    $region9: #{relational_model_forward.1} parent=1 // pred_fallthru
      _
    // Predicated region
    $region10: #{relational_model_forward.1} parent=1 // pred_check
      _
    $region11: #{relational_model_forward.1} parent=1 // pred_check_branch
      %32 = sbr.rel (0) target = $region13
    $region12: #{relational_model_forward.1} parent=1 // pred_region
      _
    $region13: #{relational_model_forward.1} parent=1 // pred_fallthru
      _
    // Predicated region
    $region14: #{relational_model_forward.1} parent=1 // pred_check
      _
    $region15: #{relational_model_forward.1} parent=1 // pred_check_branch
      %34 = sbr.rel (0) target = $region17
    $region16: #{relational_model_forward.1} parent=1 // pred_region
      %s36 = ssub.s32 2048, 2048
      %37 = vsyncadd [#allocation5], %s36
      %s38 = sshll.u32 [#allocation4], 4
      %s39 = int_to_ptr.vmem [resolvable:$true] %s38
      %44 = dma.hbm_to_vmem [thread:$0]  %s3, 2048, %s39, [#allocation5], 64, 64, 4
    $region17: #{relational_model_forward.1} parent=1 // pred_fallthru
      _
    // Predicated region
    $region18: #{relational_model_forward.1} parent=1 // pred_check
      _
    $region19: #{relational_model_forward.1} parent=1 // pred_check_branch
      %46 = sbr.rel (0) target = $region21
    $region20: #{relational_model_forward.1} parent=1 // pred_region
      _
    $region21: #{relational_model_forward.1} parent=1 // pred_fallthru
      _
    // Predicated region
    $region22: #{relational_model_forward.1} parent=1 // pred_check
      _
    $region23: #{relational_model_forward.1} parent=1 // pred_check_branch
      %48 = sbr.rel (0) target = $region25
    $region24: #{relational_model_forward.1} parent=1 // pred_region
      %s50 = ssub.s32 2048, 2048
      %51 = vsyncadd [#allocation5], %s50
      %s52 = sshll.u32 [#allocation6], 4
      %s53 = int_to_ptr.vmem [resolvable:$true] %s52
      %58 = dma.hbm_to_vmem [thread:$0]  %s5, 2048, %s53, [#allocation5], 64, 64, 4
    $region25: #{relational_model_forward.1} parent=1 // pred_fallthru
      _
    // Predicated region
    $region26: #{relational_model_forward.1} parent=1 // pred_check
      _
    $region27: #{relational_model_forward.1} parent=1 // pred_check_branch
      %60 = sbr.rel (0) target = $region29
    $region28: #{relational_model_forward.1} parent=1 // pred_region
      _
    $region29: #{relational_model_forward.1} parent=1 // pred_fallthru
      _
    // Predicated region
    $region30: #{relational_model_forward.1} parent=1 // pred_check
      _
    $region31: #{relational_model_forward.1} parent=1 // pred_check_branch
      %62 = sbr.rel (0) target = $region33
    $region32: #{relational_model_forward.1} parent=1 // pred_region
      %s64 = ssub.s32 1024, 1024
      %65 = vsyncadd [#allocation8], %s64
      %s66 = sshll.u32 [#allocation7], 4
      %s67 = int_to_ptr.vmem [resolvable:$true] %s66
      %72 = dma.hbm_to_vmem [thread:$0]  %s7, 1024, %s67, [#allocation8], 64, 64, 4
    $region33: #{relational_model_forward.1} parent=1 // pred_fallthru
      _
    // Predicated region
    $region34: #{relational_model_forward.1} parent=1 // pred_check
      _
    $region35: #{relational_model_forward.1} parent=1 // pred_check_branch
      %74 = sbr.rel (0) target = $region37
    $region36: #{relational_model_forward.1} parent=1 // pred_region
      _
    $region37: #{relational_model_forward.1} parent=1 // pred_fallthru
      _
    // Predicated region
    $region38: #{relational_model_forward.1} parent=1 // pred_check
      _
    $region39: #{relational_model_forward.1} parent=1 // pred_check_branch
      %76 = sbr.rel (0) target = $region41
    $region40: #{relational_model_forward.1} parent=1 // pred_region
      %77 = dma.done [#allocation3], 2048
    $region41: #{relational_model_forward.1} parent=1 // pred_fallthru
      _
    // Predicated region
    $region42: #{relational_model_forward.1} parent=1 // pred_check
      _
    $region43: #{relational_model_forward.1} parent=1 // pred_check_branch
      %79 = sbr.rel (0) target = $region45
    $region44: #{relational_model_forward.1} parent=1 // pred_region
      %80 = dma.done [#allocation5], 2048
    $region45: #{relational_model_forward.1} parent=1 // pred_fallthru
      _
    // Predicated region
    $region46: #{relational_model_forward.1} parent=1 // pred_check
      _
    $region47: #{relational_model_forward.1} parent=1 // pred_check_branch
      %82 = sbr.rel (0) target = $region49
    $region48: #{relational_model_forward.1} parent=1 // pred_region
      %83 = dma.done [#allocation5], 2048
    $region49: #{relational_model_forward.1} parent=1 // pred_fallthru
      _
    // Predicated region
    $region50: #{relational_model_forward.1} parent=1 // pred_check
      _
    $region51: #{relational_model_forward.1} parent=1 // pred_check_branch
      %85 = sbr.rel (0) target = $region53
    $region52: #{relational_model_forward.1} parent=1 // pred_region
      %86 = dma.done [#allocation8], 1024
    $region53: #{relational_model_forward.1} parent=1 // pred_fallthru
      _
    %v88 = vld [vmem:[%s0] sm:$0x3]
    %v89 = vld [vmem:[#allocation2] sm:$0xff]
    %v90 = vld [vmem:[#allocation2 + $0x8] sm:$0xff]
    %v91 = vld [vmem:[#allocation2 + $0x10] sm:$0xff]
    %v92 = vld [vmem:[#allocation2 + $0x18] sm:$0xff]
    %v93 = vld [vmem:[#allocation2 + $0x20] sm:$0xff]
    %v94 = vld [vmem:[#allocation2 + $0x28] sm:$0xff]
    %v95 = vld [vmem:[#allocation2 + $0x30] sm:$0xff]
    %v96 = vld [vmem:[#allocation2 + $0x38] sm:$0xff]
    %v97 = vld [vmem:[#allocation2 + $0x40] sm:$0xff]
    %v98 = vld [vmem:[#allocation2 + $0x48] sm:$0xff]
    %v99 = vld [vmem:[#allocation2 + $0x50] sm:$0xff]
    %v100 = vld [vmem:[#allocation2 + $0x58] sm:$0xff]
    %v101 = vld [vmem:[#allocation2 + $0x60] sm:$0xff]
    %v102 = vld [vmem:[#allocation2 + $0x68] sm:$0xff]
    %v103 = vld [vmem:[#allocation2 + $0x70] sm:$0xff]
    %v104 = vld [vmem:[#allocation2 + $0x78] sm:$0xff]
    %v105 = vpack.c.bf16 %v88, %v88
    %v106 = vld [vmem:[%s2] sm:$0x3]
    %v108 = vlaneseq
    %v109 = vshrl.u32 %v108, 7
    %v110 = vsub.s32 0, %v109
    %v111 = vrot.slane %v106, %v110
    %v112 = vlaneseq
    %v113 = vshrl.u32 %v112, 7
    %v114 = vsub.s32 1, %v113
    %v115 = vrot.slane %v106, %v114
    %v134 = vunpack.c.l.b16 %v89
    %v135 = vunpack.c.h.b16 %v89
    %v136 = vunpack.c.l.b16 %v90
    %v137 = vunpack.c.h.b16 %v90
    %v138 = vunpack.c.l.b16 %v91
    %v139 = vunpack.c.h.b16 %v91
    %v140 = vunpack.c.l.b16 %v92
    %v141 = vunpack.c.h.b16 %v92
    %v142 = vunpack.c.l.b16 %v93
    %v143 = vunpack.c.h.b16 %v93
    %v144 = vunpack.c.l.b16 %v94
    %v145 = vunpack.c.h.b16 %v94
    %v146 = vunpack.c.l.b16 %v95
    %v147 = vunpack.c.h.b16 %v95
    %v148 = vunpack.c.l.b16 %v96
    %v149 = vunpack.c.h.b16 %v96
    %v150 = vunpack.c.l.b16 %v97
    %v151 = vunpack.c.h.b16 %v97
    %v152 = vunpack.c.l.b16 %v98
    %v153 = vunpack.c.h.b16 %v98
    %v154 = vunpack.c.l.b16 %v99
    %v155 = vunpack.c.h.b16 %v99
    %v156 = vunpack.c.l.b16 %v100
    %v157 = vunpack.c.h.b16 %v100
    %v158 = vunpack.c.l.b16 %v101
    %v159 = vunpack.c.h.b16 %v101
    %v160 = vunpack.c.l.b16 %v102
    %v161 = vunpack.c.h.b16 %v102
    %v162 = vunpack.c.l.b16 %v103
    %v163 = vunpack.c.h.b16 %v103
    %v164 = vunpack.c.l.b16 %v104
    %v165 = vunpack.c.h.b16 %v104
    %v166 = vpack.c.b16 %v136, %v134
    %v167 = vpack.c.b16 %v137, %v135
    %v168 = vpack.c.b16 %v140, %v138
    %v169 = vpack.c.b16 %v141, %v139
    %v170 = vpack.c.b16 %v144, %v142
    %v171 = vpack.c.b16 %v145, %v143
    %v172 = vpack.c.b16 %v148, %v146
    %v173 = vpack.c.b16 %v149, %v147
    %v174 = vpack.c.b16 %v152, %v150
    %v175 = vpack.c.b16 %v153, %v151
    %v176 = vpack.c.b16 %v156, %v154
    %v177 = vpack.c.b16 %v157, %v155
    %v178 = vpack.c.b16 %v160, %v158
    %v179 = vpack.c.b16 %v161, %v159
    %v180 = vpack.c.b16 %v164, %v162
    %v181 = vpack.c.b16 %v165, %v163
    %198 = vmatprep.subr.bf16.mxu0 %v167
    %199 = vmatpush1.bf16.msra.mxu0 %v166
    %200 = vmatprep.subr.bf16.mxu0 %v169
    %201 = vmatpush1.bf16.msra.mxu0 %v168
    %202 = vmatprep.subr.bf16.mxu0 %v171
    %203 = vmatpush1.bf16.msra.mxu0 %v170
    %204 = vmatprep.subr.bf16.mxu0 %v173
    %205 = vmatpush1.bf16.msra.mxu0 %v172
    %206 = vmatprep.subr.bf16.mxu0 %v175
    %207 = vmatpush1.bf16.msra.mxu0 %v174
    %208 = vmatprep.subr.bf16.mxu0 %v177
    %209 = vmatpush1.bf16.msra.mxu0 %v176
    %210 = vmatprep.subr.bf16.mxu0 %v179
    %211 = vmatpush1.bf16.msra.mxu0 %v178
    %212 = vmatprep.subr.bf16.mxu0 %v181
    %213 = vmatpush1.bf16.msra.mxu0 %v180
    %214 = vmatprep.subr.bf16.mxu0 0
    %215 = vmatpush1.bf16.msra.mxu0 0
    %216 = vmatprep.subr.bf16.mxu0 0
    %217 = vmatpush1.bf16.msra.mxu0 0
    %218 = vmatprep.subr.bf16.mxu0 0
    %219 = vmatpush1.bf16.msra.mxu0 0
    %220 = vmatprep.subr.bf16.mxu0 0
    %221 = vmatpush1.bf16.msra.mxu0 0
    %222 = vmatprep.subr.bf16.mxu0 0
    %223 = vmatpush1.bf16.msra.mxu0 0
    %224 = vmatprep.subr.bf16.mxu0 0
    %225 = vmatpush1.bf16.msra.mxu0 0
    %226 = vmatprep.subr.bf16.mxu0 0
    %227 = vmatpush1.bf16.msra.mxu0 0
    %228 = vmatprep.subr.bf16.mxu0 0
    %229 = vmatpush1.bf16.msra.mxu0 0
    %230 = vmatprep.mubr.bf16.mxu0 0
    %231 = vmatmul.mubr.bf16.gmra.mrb[0].mxu0 %v105
    %v232 = vpop.f32.mrb[0].mxu0
    %v233 = vadd.f32 %v111, %v232
    %v234 = vpop.f32.mrb[0].mxu0
    %v235 = vadd.f32 %v115, %v234
    %v236 = vpop.f32.mrb[0].mxu0
    %v237 = vpop.f32.mrb[0].mxu0
    %238 = vdwg.mxu0
    %v239 = vmax.f32 %v233, 0.0
    %v240 = vmax.f32 %v235, 0.0
    %v241 = vld [vmem:[#allocation4] sm:$0xf]
    %v242 = vld [vmem:[#allocation4 + $0x4] sm:$0xf]
    %v243 = vld [vmem:[#allocation4 + $0x8] sm:$0xf]
    %v244 = vld [vmem:[#allocation4 + $0xc] sm:$0xf]
    %v245 = vld [vmem:[#allocation4 + $0x10] sm:$0xf]
    %v246 = vld [vmem:[#allocation4 + $0x14] sm:$0xf]
    %v247 = vld [vmem:[#allocation4 + $0x18] sm:$0xf]
    %v248 = vld [vmem:[#allocation4 + $0x1c] sm:$0xf]
    %v249 = vld [vmem:[#allocation4 + $0x20] sm:$0xf]
    %v250 = vld [vmem:[#allocation4 + $0x24] sm:$0xf]
    %v251 = vld [vmem:[#allocation4 + $0x28] sm:$0xf]
    %v252 = vld [vmem:[#allocation4 + $0x2c] sm:$0xf]
    %v253 = vld [vmem:[#allocation4 + $0x30] sm:$0xf]
    %v254 = vld [vmem:[#allocation4 + $0x34] sm:$0xf]
    %v255 = vld [vmem:[#allocation4 + $0x38] sm:$0xf]
    %v256 = vld [vmem:[#allocation4 + $0x3c] sm:$0xf]
    %v257 = vld [vmem:[#allocation4 + $0x40] sm:$0xf]
    %v258 = vld [vmem:[#allocation4 + $0x44] sm:$0xf]
    %v259 = vld [vmem:[#allocation4 + $0x48] sm:$0xf]
    %v260 = vld [vmem:[#allocation4 + $0x4c] sm:$0xf]
    %v261 = vld [vmem:[#allocation4 + $0x50] sm:$0xf]
    %v262 = vld [vmem:[#allocation4 + $0x54] sm:$0xf]
    %v263 = vld [vmem:[#allocation4 + $0x58] sm:$0xf]
    %v264 = vld [vmem:[#allocation4 + $0x5c] sm:$0xf]
    %v265 = vld [vmem:[#allocation4 + $0x60] sm:$0xf]
    %v266 = vld [vmem:[#allocation4 + $0x64] sm:$0xf]
    %v267 = vld [vmem:[#allocation4 + $0x68] sm:$0xf]
    %v268 = vld [vmem:[#allocation4 + $0x6c] sm:$0xf]
    %v269 = vld [vmem:[#allocation4 + $0x70] sm:$0xf]
    %v270 = vld [vmem:[#allocation4 + $0x74] sm:$0xf]
    %v271 = vld [vmem:[#allocation4 + $0x78] sm:$0xf]
    %v272 = vld [vmem:[#allocation4 + $0x7c] sm:$0xf]
    %v273 = vpack.c.bf16 %v239, %v239
    %v274 = vpack.c.bf16 %v240, %v240
    %v291 = vunpack.c.l.b16 %v241
    %v292 = vunpack.c.l.b16 %v242
    %v293 = vunpack.c.l.b16 %v243
    %v294 = vunpack.c.l.b16 %v244
    %v295 = vunpack.c.l.b16 %v245
    %v296 = vunpack.c.l.b16 %v246
    %v297 = vunpack.c.l.b16 %v247
    %v298 = vunpack.c.l.b16 %v248
    %v299 = vunpack.c.l.b16 %v249
    %v300 = vunpack.c.l.b16 %v250
    %v301 = vunpack.c.l.b16 %v251
    %v302 = vunpack.c.l.b16 %v252
    %v303 = vunpack.c.l.b16 %v253
    %v304 = vunpack.c.l.b16 %v254
    %v305 = vunpack.c.l.b16 %v255
    %v306 = vunpack.c.l.b16 %v256
    %v307 = vpack.c.b16 %v292, %v291
    %v308 = vpack.c.b16 %v294, %v293
    %v309 = vpack.c.b16 %v296, %v295
    %v310 = vpack.c.b16 %v298, %v297
    %v311 = vpack.c.b16 %v300, %v299
    %v312 = vpack.c.b16 %v302, %v301
    %v313 = vpack.c.b16 %v304, %v303
    %v314 = vpack.c.b16 %v306, %v305
    %323 = vmatprep.subr.bf16.mxu0 0
    %324 = vmatpush1.bf16.msra.mxu0 %v307
    %325 = vmatprep.subr.bf16.mxu0 0
    %326 = vmatpush1.bf16.msra.mxu0 %v308
    %327 = vmatprep.subr.bf16.mxu0 0
    %328 = vmatpush1.bf16.msra.mxu0 %v309
    %329 = vmatprep.subr.bf16.mxu0 0
    %330 = vmatpush1.bf16.msra.mxu0 %v310
    %331 = vmatprep.subr.bf16.mxu0 0
    %332 = vmatpush1.bf16.msra.mxu0 %v311
    %333 = vmatprep.subr.bf16.mxu0 0
    %334 = vmatpush1.bf16.msra.mxu0 %v312
    %335 = vmatprep.subr.bf16.mxu0 0
    %336 = vmatpush1.bf16.msra.mxu0 %v313
    %337 = vmatprep.subr.bf16.mxu0 0
    %338 = vmatpush1.bf16.msra.mxu0 %v314
    %339 = vmatprep.subr.bf16.mxu0 0
    %340 = vmatpush1.bf16.msra.mxu0 0
    %341 = vmatprep.subr.bf16.mxu0 0
    %342 = vmatpush1.bf16.msra.mxu0 0
    %343 = vmatprep.subr.bf16.mxu0 0
    %344 = vmatpush1.bf16.msra.mxu0 0
    %345 = vmatprep.subr.bf16.mxu0 0
    %346 = vmatpush1.bf16.msra.mxu0 0
    %347 = vmatprep.subr.bf16.mxu0 0
    %348 = vmatpush1.bf16.msra.mxu0 0
    %349 = vmatprep.subr.bf16.mxu0 0
    %350 = vmatpush1.bf16.msra.mxu0 0
    %351 = vmatprep.subr.bf16.mxu0 0
    %352 = vmatpush1.bf16.msra.mxu0 0
    %353 = vmatprep.subr.bf16.mxu0 0
    %354 = vmatpush1.bf16.msra.mxu0 0
    %355 = vmatprep.mubr.bf16.mxu0 0
    %356 = vmatmul.mubr.bf16.gmra.mrb[0].mxu0 %v273
    %v357 = vpop.f32.mrb[0].mxu0
    %v358 = vadd.f32 0.0, %v357
    %v359 = vpop.f32.mrb[0].mxu0
    %v360 = vpop.f32.mrb[0].mxu0
    %v361 = vpop.f32.mrb[0].mxu0
    %362 = vdwg.mxu0
    %v379 = vunpack.c.l.b16 %v257
    %v380 = vunpack.c.l.b16 %v258
    %v381 = vunpack.c.l.b16 %v259
    %v382 = vunpack.c.l.b16 %v260
    %v383 = vunpack.c.l.b16 %v261
    %v384 = vunpack.c.l.b16 %v262
    %v385 = vunpack.c.l.b16 %v263
    %v386 = vunpack.c.l.b16 %v264
    %v387 = vunpack.c.l.b16 %v265
    %v388 = vunpack.c.l.b16 %v266
    %v389 = vunpack.c.l.b16 %v267
    %v390 = vunpack.c.l.b16 %v268
    %v391 = vunpack.c.l.b16 %v269
    %v392 = vunpack.c.l.b16 %v270
    %v393 = vunpack.c.l.b16 %v271
    %v394 = vunpack.c.l.b16 %v272
    %v395 = vpack.c.b16 %v380, %v379
    %v396 = vpack.c.b16 %v382, %v381
    %v397 = vpack.c.b16 %v384, %v383
    %v398 = vpack.c.b16 %v386, %v385
    %v399 = vpack.c.b16 %v388, %v387
    %v400 = vpack.c.b16 %v390, %v389
    %v401 = vpack.c.b16 %v392, %v391
    %v402 = vpack.c.b16 %v394, %v393
    %411 = vmatprep.subr.bf16.mxu0 0
    %412 = vmatpush1.bf16.msra.mxu0 %v395
    %413 = vmatprep.subr.bf16.mxu0 0
    %414 = vmatpush1.bf16.msra.mxu0 %v396
    %415 = vmatprep.subr.bf16.mxu0 0
    %416 = vmatpush1.bf16.msra.mxu0 %v397
    %417 = vmatprep.subr.bf16.mxu0 0
    %418 = vmatpush1.bf16.msra.mxu0 %v398
    %419 = vmatprep.subr.bf16.mxu0 0
    %420 = vmatpush1.bf16.msra.mxu0 %v399
    %421 = vmatprep.subr.bf16.mxu0 0
    %422 = vmatpush1.bf16.msra.mxu0 %v400
    %423 = vmatprep.subr.bf16.mxu0 0
    %424 = vmatpush1.bf16.msra.mxu0 %v401
    %425 = vmatprep.subr.bf16.mxu0 0
    %426 = vmatpush1.bf16.msra.mxu0 %v402
    %427 = vmatprep.subr.bf16.mxu0 0
    %428 = vmatpush1.bf16.msra.mxu0 0
    %429 = vmatprep.subr.bf16.mxu0 0
    %430 = vmatpush1.bf16.msra.mxu0 0
    %431 = vmatprep.subr.bf16.mxu0 0
    %432 = vmatpush1.bf16.msra.mxu0 0
    %433 = vmatprep.subr.bf16.mxu0 0
    %434 = vmatpush1.bf16.msra.mxu0 0
    %435 = vmatprep.subr.bf16.mxu0 0
    %436 = vmatpush1.bf16.msra.mxu0 0
    %437 = vmatprep.subr.bf16.mxu0 0
    %438 = vmatpush1.bf16.msra.mxu0 0
    %439 = vmatprep.subr.bf16.mxu0 0
    %440 = vmatpush1.bf16.msra.mxu0 0
    %441 = vmatprep.subr.bf16.mxu0 0
    %442 = vmatpush1.bf16.msra.mxu0 0
    %443 = vmatprep.mubr.bf16.mxu0 0
    %444 = vmatmul.mubr.bf16.gmra.mrb[0].mxu0 %v274
    %v445 = vpop.f32.mrb[0].mxu0
    %v446 = vadd.f32 0.0, %v445
    %v447 = vpop.f32.mrb[0].mxu0
    %v448 = vpop.f32.mrb[0].mxu0
    %v449 = vpop.f32.mrb[0].mxu0
    %450 = vdwg.mxu0
    %v451 = vld [vmem:[%s4] sm:$0x3]
    %v453 = vlaneseq
    %v454 = vshrl.u32 %v453, 7
    %v455 = vsub.s32 0, %v454
    %v456 = vrot.slane %v451, %v455
    %v457 = vlaneseq
    %v458 = vshrl.u32 %v457, 7
    %v459 = vsub.s32 1, %v458
    %v460 = vrot.slane %v451, %v459
    %v463 = vadd.f32 %v358, %v456
    %v464 = vadd.f32 %v446, %v460
    %v465 = vmax.f32 %v463, 0.0
    %v466 = vmax.f32 %v464, 0.0
    %v467 = vld [vmem:[#allocation6] sm:$0xf]
    %v468 = vld [vmem:[#allocation6 + $0x4] sm:$0xf]
    %v469 = vld [vmem:[#allocation6 + $0x8] sm:$0xf]
    %v470 = vld [vmem:[#allocation6 + $0xc] sm:$0xf]
    %v471 = vld [vmem:[#allocation6 + $0x10] sm:$0xf]
    %v472 = vld [vmem:[#allocation6 + $0x14] sm:$0xf]
    %v473 = vld [vmem:[#allocation6 + $0x18] sm:$0xf]
    %v474 = vld [vmem:[#allocation6 + $0x1c] sm:$0xf]
    %v475 = vld [vmem:[#allocation6 + $0x20] sm:$0xf]
    %v476 = vld [vmem:[#allocation6 + $0x24] sm:$0xf]
    %v477 = vld [vmem:[#allocation6 + $0x28] sm:$0xf]
    %v478 = vld [vmem:[#allocation6 + $0x2c] sm:$0xf]
    %v479 = vld [vmem:[#allocation6 + $0x30] sm:$0xf]
    %v480 = vld [vmem:[#allocation6 + $0x34] sm:$0xf]
    %v481 = vld [vmem:[#allocation6 + $0x38] sm:$0xf]
    %v482 = vld [vmem:[#allocation6 + $0x3c] sm:$0xf]
    %v483 = vld [vmem:[#allocation6 + $0x40] sm:$0xf]
    %v484 = vld [vmem:[#allocation6 + $0x44] sm:$0xf]
    %v485 = vld [vmem:[#allocation6 + $0x48] sm:$0xf]
    %v486 = vld [vmem:[#allocation6 + $0x4c] sm:$0xf]
    %v487 = vld [vmem:[#allocation6 + $0x50] sm:$0xf]
    %v488 = vld [vmem:[#allocation6 + $0x54] sm:$0xf]
    %v489 = vld [vmem:[#allocation6 + $0x58] sm:$0xf]
    %v490 = vld [vmem:[#allocation6 + $0x5c] sm:$0xf]
    %v491 = vld [vmem:[#allocation6 + $0x60] sm:$0xf]
    %v492 = vld [vmem:[#allocation6 + $0x64] sm:$0xf]
    %v493 = vld [vmem:[#allocation6 + $0x68] sm:$0xf]
    %v494 = vld [vmem:[#allocation6 + $0x6c] sm:$0xf]
    %v495 = vld [vmem:[#allocation6 + $0x70] sm:$0xf]
    %v496 = vld [vmem:[#allocation6 + $0x74] sm:$0xf]
    %v497 = vld [vmem:[#allocation6 + $0x78] sm:$0xf]
    %v498 = vld [vmem:[#allocation6 + $0x7c] sm:$0xf]
    %v499 = vpack.c.bf16 %v465, %v465
    %v500 = vpack.c.bf16 %v466, %v466
    %v501 = vld [vmem:[%s6] sm:$0x1]
    %v503 = vlaneseq
    %v504 = vshrl.u32 %v503, 7
    %v505 = vsub.s32 0, %v504
    %v506 = vrot.slane %v501, %v505
    %v540 = vunpack.c.l.b16 %v467
    %v541 = vunpack.c.l.b16 %v468
    %v542 = vunpack.c.l.b16 %v469
    %v543 = vunpack.c.l.b16 %v470
    %v544 = vunpack.c.l.b16 %v471
    %v545 = vunpack.c.l.b16 %v472
    %v546 = vunpack.c.l.b16 %v473
    %v547 = vunpack.c.l.b16 %v474
    %v548 = vunpack.c.l.b16 %v475
    %v549 = vunpack.c.l.b16 %v476
    %v550 = vunpack.c.l.b16 %v477
    %v551 = vunpack.c.l.b16 %v478
    %v552 = vunpack.c.l.b16 %v479
    %v553 = vunpack.c.l.b16 %v480
    %v554 = vunpack.c.l.b16 %v481
    %v555 = vunpack.c.l.b16 %v482
    %v556 = vunpack.c.l.b16 %v483
    %v557 = vunpack.c.l.b16 %v484
    %v558 = vunpack.c.l.b16 %v485
    %v559 = vunpack.c.l.b16 %v486
    %v560 = vunpack.c.l.b16 %v487
    %v561 = vunpack.c.l.b16 %v488
    %v562 = vunpack.c.l.b16 %v489
    %v563 = vunpack.c.l.b16 %v490
    %v564 = vunpack.c.l.b16 %v491
    %v565 = vunpack.c.l.b16 %v492
    %v566 = vunpack.c.l.b16 %v493
    %v567 = vunpack.c.l.b16 %v494
    %v568 = vunpack.c.l.b16 %v495
    %v569 = vunpack.c.l.b16 %v496
    %v570 = vunpack.c.l.b16 %v497
    %v571 = vunpack.c.l.b16 %v498
    %v572 = vpack.c.b16 %v541, %v540
    %v573 = vpack.c.b16 %v543, %v542
    %v574 = vpack.c.b16 %v545, %v544
    %v575 = vpack.c.b16 %v547, %v546
    %v576 = vpack.c.b16 %v549, %v548
    %v577 = vpack.c.b16 %v551, %v550
    %v578 = vpack.c.b16 %v553, %v552
    %v579 = vpack.c.b16 %v555, %v554
    %v580 = vpack.c.b16 %v557, %v556
    %v581 = vpack.c.b16 %v559, %v558
    %v582 = vpack.c.b16 %v561, %v560
    %v583 = vpack.c.b16 %v563, %v562
    %v584 = vpack.c.b16 %v565, %v564
    %v585 = vpack.c.b16 %v567, %v566
    %v586 = vpack.c.b16 %v569, %v568
    %v587 = vpack.c.b16 %v571, %v570
    %604 = vmatprep.subr.bf16.mxu0 0
    %605 = vmatpush1.bf16.msra.mxu0 %v572
    %606 = vmatprep.subr.bf16.mxu0 0
    %607 = vmatpush1.bf16.msra.mxu0 %v573
    %608 = vmatprep.subr.bf16.mxu0 0
    %609 = vmatpush1.bf16.msra.mxu0 %v574
    %610 = vmatprep.subr.bf16.mxu0 0
    %611 = vmatpush1.bf16.msra.mxu0 %v575
    %612 = vmatprep.subr.bf16.mxu0 0
    %613 = vmatpush1.bf16.msra.mxu0 %v576
    %614 = vmatprep.subr.bf16.mxu0 0
    %615 = vmatpush1.bf16.msra.mxu0 %v577
    %616 = vmatprep.subr.bf16.mxu0 0
    %617 = vmatpush1.bf16.msra.mxu0 %v578
    %618 = vmatprep.subr.bf16.mxu0 0
    %619 = vmatpush1.bf16.msra.mxu0 %v579
    %620 = vmatprep.subr.bf16.mxu0 0
    %621 = vmatpush1.bf16.msra.mxu0 %v580
    %622 = vmatprep.subr.bf16.mxu0 0
    %623 = vmatpush1.bf16.msra.mxu0 %v581
    %624 = vmatprep.subr.bf16.mxu0 0
    %625 = vmatpush1.bf16.msra.mxu0 %v582
    %626 = vmatprep.subr.bf16.mxu0 0
    %627 = vmatpush1.bf16.msra.mxu0 %v583
    %628 = vmatprep.subr.bf16.mxu0 0
    %629 = vmatpush1.bf16.msra.mxu0 %v584
    %630 = vmatprep.subr.bf16.mxu0 0
    %631 = vmatpush1.bf16.msra.mxu0 %v585
    %632 = vmatprep.subr.bf16.mxu0 0
    %633 = vmatpush1.bf16.msra.mxu0 %v586
    %634 = vmatprep.subr.bf16.mxu0 0
    %635 = vmatpush1.bf16.msra.mxu0 %v587
    %636 = vmatprep.mubr.bf16.mxu0 %v500
    %637 = vmatmul.mubr.bf16.gmra.mrb[0].mxu0 %v499
    %v638 = vpop.f32.mrb[0].mxu0
    %v639 = vadd.f32 %v506, %v638
    %v640 = vpop.f32.mrb[0].mxu0
    %v641 = vpop.f32.mrb[0].mxu0
    %v642 = vpop.f32.mrb[0].mxu0
    %643 = vdwg.mxu0
    %v644 = vmax.f32 %v639, 0.0
    %v645 = vld [vmem:[#allocation7] sm:$0xf]
    %v646 = vld [vmem:[#allocation7 + $0x4] sm:$0xf]
    %v647 = vld [vmem:[#allocation7 + $0x8] sm:$0xf]
    %v648 = vld [vmem:[#allocation7 + $0xc] sm:$0xf]
    %v649 = vld [vmem:[#allocation7 + $0x10] sm:$0xf]
    %v650 = vld [vmem:[#allocation7 + $0x14] sm:$0xf]
    %v651 = vld [vmem:[#allocation7 + $0x18] sm:$0xf]
    %v652 = vld [vmem:[#allocation7 + $0x1c] sm:$0xf]
    %v653 = vld [vmem:[#allocation7 + $0x20] sm:$0xf]
    %v654 = vld [vmem:[#allocation7 + $0x24] sm:$0xf]
    %v655 = vld [vmem:[#allocation7 + $0x28] sm:$0xf]
    %v656 = vld [vmem:[#allocation7 + $0x2c] sm:$0xf]
    %v657 = vld [vmem:[#allocation7 + $0x30] sm:$0xf]
    %v658 = vld [vmem:[#allocation7 + $0x34] sm:$0xf]
    %v659 = vld [vmem:[#allocation7 + $0x38] sm:$0xf]
    %v660 = vld [vmem:[#allocation7 + $0x3c] sm:$0xf]
    %v661 = vpack.c.bf16 %v644, %v644
    %v662 = vld [vmem:[%s8] sm:$0x1]
    %v664 = vlaneseq
    %v665 = vshrl.u32 %v664, 7
    %v666 = vsub.s32 0, %v665
    %v667 = vrot.slane %v662, %v666
    %v685 = vunpack.c.l.b16 %v645
    %v686 = vunpack.c.l.b16 %v646
    %v687 = vunpack.c.l.b16 %v647
    %v688 = vunpack.c.l.b16 %v648
    %v689 = vunpack.c.l.b16 %v649
    %v690 = vunpack.c.l.b16 %v650
    %v691 = vunpack.c.l.b16 %v651
    %v692 = vunpack.c.l.b16 %v652
    %v693 = vunpack.c.l.b16 %v653
    %v694 = vunpack.c.l.b16 %v654
    %v695 = vunpack.c.l.b16 %v655
    %v696 = vunpack.c.l.b16 %v656
    %v697 = vunpack.c.l.b16 %v657
    %v698 = vunpack.c.l.b16 %v658
    %v699 = vunpack.c.l.b16 %v659
    %v700 = vunpack.c.l.b16 %v660
    %v701 = vpack.c.b16 %v686, %v685
    %v702 = vpack.c.b16 %v688, %v687
    %v703 = vpack.c.b16 %v690, %v689
    %v704 = vpack.c.b16 %v692, %v691
    %v705 = vpack.c.b16 %v694, %v693
    %v706 = vpack.c.b16 %v696, %v695
    %v707 = vpack.c.b16 %v698, %v697
    %v708 = vpack.c.b16 %v700, %v699
    %717 = vmatprep.subr.bf16.mxu0 0
    %718 = vmatpush1.bf16.msra.mxu0 %v701
    %719 = vmatprep.subr.bf16.mxu0 0
    %720 = vmatpush1.bf16.msra.mxu0 %v702
    %721 = vmatprep.subr.bf16.mxu0 0
    %722 = vmatpush1.bf16.msra.mxu0 %v703
    %723 = vmatprep.subr.bf16.mxu0 0
    %724 = vmatpush1.bf16.msra.mxu0 %v704
    %725 = vmatprep.subr.bf16.mxu0 0
    %726 = vmatpush1.bf16.msra.mxu0 %v705
    %727 = vmatprep.subr.bf16.mxu0 0
    %728 = vmatpush1.bf16.msra.mxu0 %v706
    %729 = vmatprep.subr.bf16.mxu0 0
    %730 = vmatpush1.bf16.msra.mxu0 %v707
    %731 = vmatprep.subr.bf16.mxu0 0
    %732 = vmatpush1.bf16.msra.mxu0 %v708
    %733 = vmatprep.subr.bf16.mxu0 0
    %734 = vmatpush1.bf16.msra.mxu0 0
    %735 = vmatprep.subr.bf16.mxu0 0
    %736 = vmatpush1.bf16.msra.mxu0 0
    %737 = vmatprep.subr.bf16.mxu0 0
    %738 = vmatpush1.bf16.msra.mxu0 0
    %739 = vmatprep.subr.bf16.mxu0 0
    %740 = vmatpush1.bf16.msra.mxu0 0
    %741 = vmatprep.subr.bf16.mxu0 0
    %742 = vmatpush1.bf16.msra.mxu0 0
    %743 = vmatprep.subr.bf16.mxu0 0
    %744 = vmatpush1.bf16.msra.mxu0 0
    %745 = vmatprep.subr.bf16.mxu0 0
    %746 = vmatpush1.bf16.msra.mxu0 0
    %747 = vmatprep.subr.bf16.mxu0 0
    %748 = vmatpush1.bf16.msra.mxu0 0
    %749 = vmatprep.mubr.bf16.mxu0 0
    %750 = vmatmul.mubr.bf16.gmra.mrb[0].mxu0 %v661
    %v751 = vpop.f32.mrb[0].mxu0
    %v752 = vadd.f32 %v667, %v751
    %v753 = vpop.f32.mrb[0].mxu0
    %v754 = vpop.f32.mrb[0].mxu0
    %v755 = vpop.f32.mrb[0].mxu0
    %756 = vdwg.mxu0
    %v757 = vmax.f32 %v752, 0.0
    %758 = vst [vmem:[%s9] sm:$0x3] %v757
    // Predicated region
    $region54: #{relational_model_forward.1} parent=1 // pred_check
      _
    $region55: #{relational_model_forward.1} parent=1 // pred_check_branch
      %760 = sbr.rel (0) target = $region57
    $region56: #{relational_model_forward.1} parent=1 // pred_region
      _
    $region57: #{relational_model_forward.1} parent=1 // pred_fallthru
      _
    // Predicated region
    $region58: #{relational_model_forward.1} parent=1 // pred_check
      _
    $region59: #{relational_model_forward.1} parent=1 // pred_check_branch
      %762 = sbr.rel (0) target = $region61
    $region60: #{relational_model_forward.1} parent=1 // pred_region
      _
    $region61: #{relational_model_forward.1} parent=1 // pred_fallthru
      _
    %763 = vsyncpa [#allocation3], 1
    %764 = vsyncpa [#allocation5], 1
    %765 = vsyncpa [#allocation8], 1

</llo_original>
